<compile_context>
chip_gen: v6e
topology: v6e:2x2x1
jax: 0.10.0
libtpu: 0.0.40
codegen_flags: <defaults>
</compile_context>

<pallas_src>
import functools

import jax
import jax.numpy as jnp
from jax.experimental import pallas as pl
from jax.experimental.pallas import tpu as pltpu

RMS_EPS = 1e-8
EPSILON = 1e-7
MAX_TILE_E = 2048


def _log_sigmoid_eps(x):
    # log(sigmoid(x) + EPSILON), with sigmoid written explicitly so the Pallas
    # kernel (Mosaic lowering) and the XLA reference use the same algebra.
    # 1 - sigmoid(x) + eps is evaluated as sigmoid(-x) + eps by the callers
    # (identical in exact arithmetic, stable in f32).
    return jnp.log(1.0 / (1.0 + jnp.exp(-x)) + EPSILON)


def line_kernel(num_edges, src_ref, dst_ref, nsrc_ref, ndst_ref, w_ref,
                out_ref, acc_ref):
    tile, d = src_ref.shape
    inv_d = 1.0 / float(d)
    inv_sqrt_d = float(d) ** -0.5

    @pl.when(pl.program_id(0) == 0)
    def _init():
        acc_ref[...] = jnp.zeros_like(acc_ref)

    # Hoist the RMSNorm-weight broadcast (reused 4x; JAX does not CSE it).
    w_b = jnp.broadcast_to(w_ref[...].astype(jnp.float32), (tile, d))

    def rms_norm(x):
        ssq = jnp.sum(x * x, axis=-1, keepdims=True)            # [tile, 1]
        rms = jnp.sqrt(ssq) * inv_sqrt_d                         # [tile, 1]
        inv = 1.0 / (rms + RMS_EPS)                              # E divides, not E*D
        return (x * inv) * w_b

    e_src = rms_norm(src_ref[...].astype(jnp.float32))           # [tile, D]
    e_dst = rms_norm(dst_ref[...].astype(jnp.float32))
    e_nsrc = rms_norm(nsrc_ref[...].astype(jnp.float32))
    e_ndst = rms_norm(ndst_ref[...].astype(jnp.float32))

    # Single D-reduction per product; mean = sum * (1/D).
    pos_sum = jnp.sum(e_src * e_dst, axis=-1, keepdims=True)     # [tile, 1]
    neg_sum = jnp.sum(e_nsrc * e_ndst, axis=-1, keepdims=True)   # [tile, 1]
    pos_mean = pos_sum * inv_d
    neg_mean = neg_sum * inv_d

    per_edge = (_log_sigmoid_eps(pos_mean)     # 1st-order positive
                + _log_sigmoid_eps(-neg_mean)  # 1st-order: log(1-sig(x)+eps)
                + _log_sigmoid_eps(pos_sum)    # 2nd-order positive
                + _log_sigmoid_eps(-neg_sum))  # 2nd-order: log(1-sig(x)+eps)

    # Mask rows of a (possibly ragged) last tile.
    row = (jax.lax.broadcasted_iota(jnp.int32, (tile, 1), 0)
           + pl.program_id(0) * tile)
    per_edge = jnp.where(row < num_edges, per_edge, 0.0)

    acc_ref[...] += jnp.reshape(jnp.sum(per_edge), (1, 1))

    @pl.when(pl.program_id(0) == pl.num_programs(0) - 1)
    def _finalize():
        out_ref[0, 0] = acc_ref[0, 0] * (-1.0 / num_edges)


def _choose_tile(num_edges, d):
    # ~8 MiB for the 4 double-buffered f32 input streams: 4 * 2 * tile * D * 4B.
    rows = (8 * 1024 * 1024) // (32 * d)
    rows = max(8, (rows // 8) * 8)
    rows = min(rows, MAX_TILE_E)
    return num_edges if num_edges <= rows else rows


@jax.jit
def line_forward(emb_table, rms_weight, pos_src, pos_dst, neg_src, neg_dst):
    # Glue: embedding-table gather (data-dependent indexing) and the mean over
    # the K negative samples; after this the kernel only reads 4x [E, D].
    f32 = jnp.float32
    emb_src = jnp.take(emb_table, pos_src, axis=0).astype(f32)               # [E, D]
    emb_dst = jnp.take(emb_table, pos_dst, axis=0).astype(f32)               # [E, D]
    emb_neg_src = jnp.mean(jnp.take(emb_table, neg_src, axis=0).astype(f32), axis=1)  # [E, D]
    emb_neg_dst = jnp.mean(jnp.take(emb_table, neg_dst, axis=0).astype(f32), axis=1)  # [E, D]

    E, D = emb_src.shape
    w = rms_weight.reshape(1, D).astype(f32)

    tile = _choose_tile(E, D)
    grid = (pl.cdiv(E, tile),)

    edge_spec = pl.BlockSpec((tile, D), lambda i: (i, 0))
    out = pl.pallas_call(
        functools.partial(line_kernel, E),
        out_shape=jax.ShapeDtypeStruct((1, 1), jnp.float32),
        grid=grid,
        in_specs=[edge_spec, edge_spec, edge_spec, edge_spec,
                  pl.BlockSpec((1, D), lambda i: (0, 0))],
        out_specs=pl.BlockSpec((1, 1), lambda i: (0, 0),
                               memory_space=pltpu.MemorySpace.SMEM),
        scratch_shapes=[pltpu.VMEM((1, 1), jnp.float32)],
        compiler_params=pltpu.CompilerParams(
            dimension_semantics=("arbitrary",),     # E is a reduction axis
            vmem_limit_bytes=32 * 1024 * 1024),
    )(emb_src, emb_dst, emb_neg_src, emb_neg_dst, w)
    return out[0, 0]


def line_reference(emb_table, rms_weight, pos_src, pos_dst, neg_src, neg_dst):
    d = emb_table.shape[-1]

    def rms_norm(x):
        rms = jnp.linalg.norm(x, axis=-1, keepdims=True) * (d ** -0.5)
        return rms_weight * (x / (rms + RMS_EPS))

    emb_src = rms_norm(jnp.take(emb_table, pos_src, axis=0))
    emb_dst = rms_norm(jnp.take(emb_table, pos_dst, axis=0))
    emb_neg_src = rms_norm(jnp.mean(jnp.take(emb_table, neg_src, axis=0), axis=1))
    emb_neg_dst = rms_norm(jnp.mean(jnp.take(emb_table, neg_dst, axis=0), axis=1))

    pos_score = jnp.mean(emb_src * emb_dst, axis=1)
    neg_score = jnp.mean(emb_neg_src * emb_neg_dst, axis=1)
    one_order = -jnp.mean(_log_sigmoid_eps(pos_score) + _log_sigmoid_eps(-neg_score))
    # Full f32 precision so the reference matmul diagonal matches exact
    # row-wise dot products (default TPU matmul precision is bf16).
    hi = jax.lax.Precision.HIGHEST
    pos_edges = jnp.diagonal(jnp.matmul(emb_src, emb_dst.T, precision=hi))
    neg_edges = jnp.diagonal(jnp.matmul(emb_neg_src, emb_neg_dst.T, precision=hi))
    two_order = -jnp.mean(_log_sigmoid_eps(pos_edges) + _log_sigmoid_eps(-neg_edges))
    return one_order + two_order


if __name__ == "__main__":
    num_nodes = 64
    embedding_dim = 32
    num_edges = 8          # E
    num_neg = 4            # K negative samples per edge

    key = jax.random.PRNGKey(0)
    k_emb, k_ps, k_pd, k_ns, k_nd = jax.random.split(key, 5)

    # nn.Embedding default init: N(0, 1); RMSNorm weight init: ones
    emb_table = jax.random.normal(k_emb, (num_nodes, embedding_dim), jnp.float32)
    rms_weight = jnp.ones((embedding_dim,), jnp.float32)

    pos_src = jax.random.randint(k_ps, (num_edges,), 0, num_nodes)
    pos_dst = jax.random.randint(k_pd, (num_edges,), 0, num_nodes)
    neg_src = jax.random.randint(k_ns, (num_edges, num_neg), 0, num_nodes)
    neg_dst = jax.random.randint(k_nd, (num_edges, num_neg), 0, num_nodes)

    loss = line_forward(emb_table, rms_weight, pos_src, pos_dst, neg_src, neg_dst)
    loss = jax.block_until_ready(loss)

    ref = line_reference(emb_table, rms_weight, pos_src, pos_dst, neg_src, neg_dst)
    assert jnp.allclose(loss, ref, rtol=1e-3, atol=1e-4), (loss, ref)

    print("KERNEL_OK")
</pallas_src>

<mosaic_0001>
module attributes {stable_mosaic.version = 11 : i64} {
  func.func @line_kernel(%arg0: i32, %arg1: memref<8x32xf32, #tpu.memory_space<vmem>>, %arg2: memref<8x32xf32, #tpu.memory_space<vmem>>, %arg3: memref<8x32xf32, #tpu.memory_space<vmem>>, %arg4: memref<8x32xf32, #tpu.memory_space<vmem>>, %arg5: memref<1x32xf32, #tpu.memory_space<vmem>>, %arg6: memref<1x1xf32, #tpu.memory_space<smem>>, %arg7: memref<1x1xf32, #tpu.memory_space<vmem>>) attributes {dimension_semantics = [#tpu.dimension_semantics<arbitrary>], iteration_bounds = array<i64: 1>, scalar_prefetch = 0 : i64, scratch_operands = 1 : i64, tpu.core_type = #tpu.core_type<tc>, window_params = [{transform_indices = @transform_0, window_bounds = array<i64: 8, 32>}, {transform_indices = @transform_1, window_bounds = array<i64: 8, 32>}, {transform_indices = @transform_2, window_bounds = array<i64: 8, 32>}, {transform_indices = @transform_3, window_bounds = array<i64: 8, 32>}, {pipeline_mode = #tpu.pipeline_mode<synchronous>, transform_indices = @transform_4, window_bounds = array<i64: 1, 32>}, {transform_indices = @transform_5, window_bounds = array<i64: 1, 1>}]} {
    %c0_i32 = arith.constant 0 : i32
    %0 = arith.cmpi eq, %arg0, %c0_i32 : i32
    %1 = arith.extui %0 : i1 to i32
    %c0_i32_0 = arith.constant 0 : i32
    %2 = arith.cmpi ne, %1, %c0_i32_0 : i32
    scf.if %2 {
      %cst_56 = arith.constant 0.000000e+00 : f32
      %138 = vector.broadcast %cst_56 : f32 to vector<1x1xf32>
      %c0_57 = arith.constant 0 : index
      %c0_58 = arith.constant 0 : index
      %139 = vector.load %arg7[%c0_57, %c0_58] : memref<1x1xf32, #tpu.memory_space<vmem>>, vector<1x1xf32>
      tpu.vector_store %arg7[%c0_57, %c0_58], %138 {strides = array<i32>} : memref<1x1xf32, #tpu.memory_space<vmem>>, vector<1x1xf32>,
    } else {
    }
    %c0 = arith.constant 0 : index
    %c0_1 = arith.constant 0 : index
    %3 = vector.load %arg5[%c0, %c0_1] : memref<1x32xf32, #tpu.memory_space<vmem>>, vector<1x32xf32>
    %4 = vector.shape_cast %3 : vector<1x32xf32> to vector<1x32xf32>
    %5 = vector.broadcast %4 : vector<1x32xf32> to vector<8x32xf32>
    %c0_2 = arith.constant 0 : index
    %c0_3 = arith.constant 0 : index
    %6 = vector.load %arg1[%c0_2, %c0_3] : memref<8x32xf32, #tpu.memory_space<vmem>>, vector<8x32xf32>
    %7 = arith.mulf %6, %6 : vector<8x32xf32>
    %cst = arith.constant dense<0.000000e+00> : vector<8xf32>
    %8 = vector.multi_reduction <add>, %7, %cst [1] : vector<8x32xf32> to vector<8xf32>
    %9 = vector.shape_cast %8 : vector<8xf32> to vector<8x1xf32>
    %10 = math.sqrt %9 : vector<8x1xf32>
    %cst_4 = arith.constant 0.176776692 : f32
    %11 = vector.broadcast %cst_4 : f32 to vector<8x1xf32>
    %12 = arith.mulf %10, %11 : vector<8x1xf32>
    %cst_5 = arith.constant 9.99999993E-9 : f32
    %13 = vector.broadcast %cst_5 : f32 to vector<8x1xf32>
    %14 = arith.addf %12, %13 : vector<8x1xf32>
    %cst_6 = arith.constant 1.000000e+00 : f32
    %15 = vector.broadcast %cst_6 : f32 to vector<8x1xf32>
    %16 = arith.divf %15, %14 : vector<8x1xf32>
    %17 = vector.broadcast %16 : vector<8x1xf32> to vector<8x32xf32>
    %18 = arith.mulf %6, %17 : vector<8x32xf32>
    %19 = arith.mulf %18, %5 : vector<8x32xf32>
    %c0_7 = arith.constant 0 : index
    %c0_8 = arith.constant 0 : index
    %20 = vector.load %arg2[%c0_7, %c0_8] : memref<8x32xf32, #tpu.memory_space<vmem>>, vector<8x32xf32>
    %21 = arith.mulf %20, %20 : vector<8x32xf32>
    %cst_9 = arith.constant dense<0.000000e+00> : vector<8xf32>
    %22 = vector.multi_reduction <add>, %21, %cst_9 [1] : vector<8x32xf32> to vector<8xf32>
    %23 = vector.shape_cast %22 : vector<8xf32> to vector<8x1xf32>
    %24 = math.sqrt %23 : vector<8x1xf32>
    %cst_10 = arith.constant 0.176776692 : f32
    %25 = vector.broadcast %cst_10 : f32 to vector<8x1xf32>
    %26 = arith.mulf %24, %25 : vector<8x1xf32>
    %cst_11 = arith.constant 9.99999993E-9 : f32
    %27 = vector.broadcast %cst_11 : f32 to vector<8x1xf32>
    %28 = arith.addf %26, %27 : vector<8x1xf32>
    %cst_12 = arith.constant 1.000000e+00 : f32
    %29 = vector.broadcast %cst_12 : f32 to vector<8x1xf32>
    %30 = arith.divf %29, %28 : vector<8x1xf32>
    %31 = vector.broadcast %30 : vector<8x1xf32> to vector<8x32xf32>
    %32 = arith.mulf %20, %31 : vector<8x32xf32>
    %33 = arith.mulf %32, %5 : vector<8x32xf32>
    %c0_13 = arith.constant 0 : index
    %c0_14 = arith.constant 0 : index
    %34 = vector.load %arg3[%c0_13, %c0_14] : memref<8x32xf32, #tpu.memory_space<vmem>>, vector<8x32xf32>
    %35 = arith.mulf %34, %34 : vector<8x32xf32>
    %cst_15 = arith.constant dense<0.000000e+00> : vector<8xf32>
    %36 = vector.multi_reduction <add>, %35, %cst_15 [1] : vector<8x32xf32> to vector<8xf32>
    %37 = vector.shape_cast %36 : vector<8xf32> to vector<8x1xf32>
    %38 = math.sqrt %37 : vector<8x1xf32>
    %cst_16 = arith.constant 0.176776692 : f32
    %39 = vector.broadcast %cst_16 : f32 to vector<8x1xf32>
    %40 = arith.mulf %38, %39 : vector<8x1xf32>
    %cst_17 = arith.constant 9.99999993E-9 : f32
    %41 = vector.broadcast %cst_17 : f32 to vector<8x1xf32>
    %42 = arith.addf %40, %41 : vector<8x1xf32>
    %cst_18 = arith.constant 1.000000e+00 : f32
    %43 = vector.broadcast %cst_18 : f32 to vector<8x1xf32>
    %44 = arith.divf %43, %42 : vector<8x1xf32>
    %45 = vector.broadcast %44 : vector<8x1xf32> to vector<8x32xf32>
    %46 = arith.mulf %34, %45 : vector<8x32xf32>
    %47 = arith.mulf %46, %5 : vector<8x32xf32>
    %c0_19 = arith.constant 0 : index
    %c0_20 = arith.constant 0 : index
    %48 = vector.load %arg4[%c0_19, %c0_20] : memref<8x32xf32, #tpu.memory_space<vmem>>, vector<8x32xf32>
    %49 = arith.mulf %48, %48 : vector<8x32xf32>
    %cst_21 = arith.constant dense<0.000000e+00> : vector<8xf32>
    %50 = vector.multi_reduction <add>, %49, %cst_21 [1] : vector<8x32xf32> to vector<8xf32>
    %51 = vector.shape_cast %50 : vector<8xf32> to vector<8x1xf32>
    %52 = math.sqrt %51 : vector<8x1xf32>
    %cst_22 = arith.constant 0.176776692 : f32
    %53 = vector.broadcast %cst_22 : f32 to vector<8x1xf32>
    %54 = arith.mulf %52, %53 : vector<8x1xf32>
    %cst_23 = arith.constant 9.99999993E-9 : f32
    %55 = vector.broadcast %cst_23 : f32 to vector<8x1xf32>
    %56 = arith.addf %54, %55 : vector<8x1xf32>
    %cst_24 = arith.constant 1.000000e+00 : f32
    %57 = vector.broadcast %cst_24 : f32 to vector<8x1xf32>
    %58 = arith.divf %57, %56 : vector<8x1xf32>
    %59 = vector.broadcast %58 : vector<8x1xf32> to vector<8x32xf32>
    %60 = arith.mulf %48, %59 : vector<8x32xf32>
    %61 = arith.mulf %60, %5 : vector<8x32xf32>
    %62 = arith.mulf %19, %33 : vector<8x32xf32>
    %cst_25 = arith.constant dense<0.000000e+00> : vector<8xf32>
    %63 = vector.multi_reduction <add>, %62, %cst_25 [1] : vector<8x32xf32> to vector<8xf32>
    %64 = vector.shape_cast %63 : vector<8xf32> to vector<8x1xf32>
    %65 = arith.mulf %47, %61 : vector<8x32xf32>
    %cst_26 = arith.constant dense<0.000000e+00> : vector<8xf32>
    %66 = vector.multi_reduction <add>, %65, %cst_26 [1] : vector<8x32xf32> to vector<8xf32>
    %67 = vector.shape_cast %66 : vector<8xf32> to vector<8x1xf32>
    %cst_27 = arith.constant 3.125000e-02 : f32
    %68 = vector.broadcast %cst_27 : f32 to vector<8x1xf32>
    %69 = arith.mulf %64, %68 : vector<8x1xf32>
    %cst_28 = arith.constant 3.125000e-02 : f32
    %70 = vector.broadcast %cst_28 : f32 to vector<8x1xf32>
    %71 = arith.mulf %67, %70 : vector<8x1xf32>
    %cst_29 = arith.constant 0.000000e+00 : f32
    %72 = vector.broadcast %cst_29 : f32 to vector<8x1xf32>
    %73 = arith.subf %72, %69 : vector<8x1xf32>
    %74 = math.exp %73 : vector<8x1xf32>
    %cst_30 = arith.constant 1.000000e+00 : f32
    %75 = vector.broadcast %cst_30 : f32 to vector<8x1xf32>
    %76 = arith.addf %75, %74 : vector<8x1xf32>
    %cst_31 = arith.constant 1.000000e+00 : f32
    %77 = vector.broadcast %cst_31 : f32 to vector<8x1xf32>
    %78 = arith.divf %77, %76 : vector<8x1xf32>
    %cst_32 = arith.constant 1.000000e-07 : f32
    %79 = vector.broadcast %cst_32 : f32 to vector<8x1xf32>
    %80 = arith.addf %78, %79 : vector<8x1xf32>
    %81 = math.log %80 : vector<8x1xf32>
    %cst_33 = arith.constant 0.000000e+00 : f32
    %82 = vector.broadcast %cst_33 : f32 to vector<8x1xf32>
    %83 = arith.subf %82, %71 : vector<8x1xf32>
    %cst_34 = arith.constant 0.000000e+00 : f32
    %84 = vector.broadcast %cst_34 : f32 to vector<8x1xf32>
    %85 = arith.subf %84, %83 : vector<8x1xf32>
    %86 = math.exp %85 : vector<8x1xf32>
    %cst_35 = arith.constant 1.000000e+00 : f32
    %87 = vector.broadcast %cst_35 : f32 to vector<8x1xf32>
    %88 = arith.addf %87, %86 : vector<8x1xf32>
    %cst_36 = arith.constant 1.000000e+00 : f32
    %89 = vector.broadcast %cst_36 : f32 to vector<8x1xf32>
    %90 = arith.divf %89, %88 : vector<8x1xf32>
    %cst_37 = arith.constant 1.000000e-07 : f32
    %91 = vector.broadcast %cst_37 : f32 to vector<8x1xf32>
    %92 = arith.addf %90, %91 : vector<8x1xf32>
    %93 = math.log %92 : vector<8x1xf32>
    %94 = arith.addf %81, %93 : vector<8x1xf32>
    %cst_38 = arith.constant 0.000000e+00 : f32
    %95 = vector.broadcast %cst_38 : f32 to vector<8x1xf32>
    %96 = arith.subf %95, %64 : vector<8x1xf32>
    %97 = math.exp %96 : vector<8x1xf32>
    %cst_39 = arith.constant 1.000000e+00 : f32
    %98 = vector.broadcast %cst_39 : f32 to vector<8x1xf32>
    %99 = arith.addf %98, %97 : vector<8x1xf32>
    %cst_40 = arith.constant 1.000000e+00 : f32
    %100 = vector.broadcast %cst_40 : f32 to vector<8x1xf32>
    %101 = arith.divf %100, %99 : vector<8x1xf32>
    %cst_41 = arith.constant 1.000000e-07 : f32
    %102 = vector.broadcast %cst_41 : f32 to vector<8x1xf32>
    %103 = arith.addf %101, %102 : vector<8x1xf32>
    %104 = math.log %103 : vector<8x1xf32>
    %105 = arith.addf %94, %104 : vector<8x1xf32>
    %cst_42 = arith.constant 0.000000e+00 : f32
    %106 = vector.broadcast %cst_42 : f32 to vector<8x1xf32>
    %107 = arith.subf %106, %67 : vector<8x1xf32>
    %cst_43 = arith.constant 0.000000e+00 : f32
    %108 = vector.broadcast %cst_43 : f32 to vector<8x1xf32>
    %109 = arith.subf %108, %107 : vector<8x1xf32>
    %110 = math.exp %109 : vector<8x1xf32>
    %cst_44 = arith.constant 1.000000e+00 : f32
    %111 = vector.broadcast %cst_44 : f32 to vector<8x1xf32>
    %112 = arith.addf %111, %110 : vector<8x1xf32>
    %cst_45 = arith.constant 1.000000e+00 : f32
    %113 = vector.broadcast %cst_45 : f32 to vector<8x1xf32>
    %114 = arith.divf %113, %112 : vector<8x1xf32>
    %cst_46 = arith.constant 1.000000e-07 : f32
    %115 = vector.broadcast %cst_46 : f32 to vector<8x1xf32>
    %116 = arith.addf %114, %115 : vector<8x1xf32>
    %117 = math.log %116 : vector<8x1xf32>
    %118 = arith.addf %105, %117 : vector<8x1xf32>
    %119 = tpu.iota {dimensions = array<i32: 0>} : vector<8x1xi32>
    %c8_i32 = arith.constant 8 : i32
    %120 = arith.muli %arg0, %c8_i32 : i32
    %121 = vector.broadcast %120 : i32 to vector<8x1xi32>
    %122 = arith.addi %119, %121 : vector<8x1xi32>
    %c8_i32_47 = arith.constant 8 : i32
    %123 = vector.broadcast %c8_i32_47 : i32 to vector<8x1xi32>
    %124 = arith.cmpi slt, %122, %123 : vector<8x1xi32>
    %cst_48 = arith.constant 0.000000e+00 : f32
    %125 = vector.broadcast %cst_48 : f32 to vector<8x1xf32>
    %126 = arith.select %124, %118, %125 : vector<8x1xi1>, vector<8x1xf32>
    %c0_49 = arith.constant 0 : index
    %c0_50 = arith.constant 0 : index
    %127 = vector.load %arg7[%c0_49, %c0_50] : memref<1x1xf32, #tpu.memory_space<vmem>>, vector<1x1xf32>
    %128 = vector.shape_cast %126 : vector<8x1xf32> to vector<1x8x1xf32>
    %cst_51 = arith.constant dense<0.000000e+00> : vector<1xf32>
    %129 = vector.multi_reduction <add>, %128, %cst_51 [1, 2] : vector<1x8x1xf32> to vector<1xf32>
    %130 = vector.shape_cast %129 : vector<1xf32> to vector<1x1x1xf32>
    %131 = vector.extract %130[0, 0, 0] : f32 from vector<1x1x1xf32>
    %132 = vector.broadcast %131 : f32 to vector<1x1xf32>
    %133 = arith.addf %127, %132 : vector<1x1xf32>
    %c0_52 = arith.constant 0 : index
    %c0_53 = arith.constant 0 : index
    %134 = vector.load %arg7[%c0_52, %c0_53] : memref<1x1xf32, #tpu.memory_space<vmem>>, vector<1x1xf32>
    tpu.vector_store %arg7[%c0_52, %c0_53], %133 {strides = array<i32>} : memref<1x1xf32, #tpu.memory_space<vmem>>, vector<1x1xf32>,
    %c0_i32_54 = arith.constant 0 : i32
    %135 = arith.cmpi eq, %arg0, %c0_i32_54 : i32
    %136 = arith.extui %135 : i1 to i32
    %c0_i32_55 = arith.constant 0 : i32
    %137 = arith.cmpi ne, %136, %c0_i32_55 : i32
    scf.if %137 {
      %c0_56 = arith.constant 0 : index
      %c0_57 = arith.constant 0 : index
      %138 = vector.load %arg7[%c0_56, %c0_57] : memref<1x1xf32, #tpu.memory_space<vmem>>, vector<1x1xf32>
      %139 = vector.extract %138[0, 0] : f32 from vector<1x1xf32>
      %cst_58 = arith.constant -1.250000e-01 : f32
      %140 = arith.mulf %139, %cst_58 : f32
      %c0_59 = arith.constant 0 : index
      %c0_60 = arith.constant 0 : index
      %141 = memref.load %arg6[%c0_59, %c0_60] : memref<1x1xf32, #tpu.memory_space<smem>>
      memref.store %140, %arg6[%c0_59, %c0_60] : memref<1x1xf32, #tpu.memory_space<smem>>
    } else {
    }
    return
  }
  func.func @transform_0(%arg0: i32) -> (i32, i32) {
    %c0_i32 = arith.constant 0 : i32
    %c0_i32_0 = arith.constant 0 : i32
    return %arg0, %c0_i32 : i32, i32
  }
  func.func @transform_1(%arg0: i32) -> (i32, i32) {
    %c0_i32 = arith.constant 0 : i32
    %c0_i32_0 = arith.constant 0 : i32
    return %arg0, %c0_i32 : i32, i32
  }
  func.func @transform_2(%arg0: i32) -> (i32, i32) {
    %c0_i32 = arith.constant 0 : i32
    %c0_i32_0 = arith.constant 0 : i32
    return %arg0, %c0_i32 : i32, i32
  }
  func.func @transform_3(%arg0: i32) -> (i32, i32) {
    %c0_i32 = arith.constant 0 : i32
    %c0_i32_0 = arith.constant 0 : i32
    return %arg0, %c0_i32 : i32, i32
  }
  func.func @transform_4(%arg0: i32) -> (i32, i32) {
    %c0_i32 = arith.constant 0 : i32
    %c0_i32_0 = arith.constant 0 : i32
    %c0_i32_1 = arith.constant 0 : i32
    return %c0_i32, %c0_i32_0 : i32, i32
  }
  func.func @transform_5(%arg0: i32) -> (i32, i32) {
    %c0_i32 = arith.constant 0 : i32
    %c0_i32_0 = arith.constant 0 : i32
    %c0_i32_1 = arith.constant 0 : i32
    return %c0_i32, %c0_i32_0 : i32, i32
  }
}

</mosaic_0001>

<llo_original>
// kernel: line_forward.1
$region0: #{line_forward.1}
  #allocation0 [shape = 'u32[]', space=smem, size = 0x4, offset = 0x4, fixed_abs, tag = 'smem constant byte address 0x4 - core index']
  #allocation1 [shape = 'u32[144,128]{1,0:T(1,128)}', space=vmem, size = 0x12000, scoped, tag = 'internal scratch']
  #allocation2 [shape = 'f32[1,1]{1,0:T(1,128)}', space=vmem, size = 0x200, scoped, tag = 'scratch operand']
  %s0 = inlined_call_operand.vmem [shape: f32[8,32], index: 0, kind: input, shape index: {}]
  %s1 = inlined_call_operand.vmem [shape: f32[8,32], index: 1, kind: input, shape index: {}]
  %s2 = inlined_call_operand.vmem [shape: f32[8,32], index: 2, kind: input, shape index: {}]
  %s3 = inlined_call_operand.vmem [shape: f32[8,32], index: 3, kind: input, shape index: {}]
  %s4 = inlined_call_operand.vmem [shape: f32[1,32], index: 4, kind: input, shape index: {}]
  %s5 = inlined_call_operand.hbm [shape: f32[1,1], index: 5, kind: output, shape index: {}]
  %s6 = sld [smem:[#allocation0]]
  $region38: #{line_forward.1} parent=0
    _
  %s8 = ssub.s32 1, %s6
  %s9 = scalar_select 0, %s8, %s6
  $region1: #{line_forward.1} parent=0
    #allocation3 [shape = 'u8[512]{0}', space=smem, size = 0x200, scoped, tag = 'output window, operand 0, single buffered']
    #allocation4 [shape = 's32[1]{0}', space=sflag, size = 0x4, scoped, tag = 'scoped memory for line_forward.1']
    %10 = vsyncpa [#allocation4], 0
    // Predicated region
    $region2: #{line_forward.1} parent=1 // pred_check
      _
    $region3: #{line_forward.1} parent=1 // pred_check_branch
      %12 = sbr.rel (0) target = $region5
    $region4: #{line_forward.1} parent=1 // pred_region
      _
    $region5: #{line_forward.1} parent=1 // pred_fallthru
      _
    // Predicated region
    $region6: #{line_forward.1} parent=1 // pred_check
      _
    $region7: #{line_forward.1} parent=1 // pred_check_branch
      %14 = sbr.rel (0) target = $region9
    $region8: #{line_forward.1} parent=1 // pred_region
      _
    $region9: #{line_forward.1} parent=1 // pred_fallthru
      _
    // Predicated region
    $region10: #{line_forward.1} parent=1 // pred_check
      _
    $region11: #{line_forward.1} parent=1 // pred_check_branch
      %16 = sbr.rel (0) target = $region13
    $region12: #{line_forward.1} parent=1 // pred_region
      _
    $region13: #{line_forward.1} parent=1 // pred_fallthru
      _
    // Predicated region
    $region14: #{line_forward.1} parent=1 // pred_check
      _
    $region15: #{line_forward.1} parent=1 // pred_check_branch
      %18 = sbr.rel (0) target = $region17
    $region16: #{line_forward.1} parent=1 // pred_region
      _
    $region17: #{line_forward.1} parent=1 // pred_fallthru
      _
    // Predicated region
    $region18: #{line_forward.1} parent=1 // pred_check
      _
    $region19: #{line_forward.1} parent=1 // pred_check_branch
      %20 = sbr.rel (0) target = $region21
    $region20: #{line_forward.1} parent=1 // pred_region
      _
    $region21: #{line_forward.1} parent=1 // pred_fallthru
      _
    %p21 = scmp.eq.s32.totalorder 0, 0
    // Predicated region
    $region22: #{line_forward.1} parent=1 // pred_check
      %p22 = pneg %p21
    $region23: #{line_forward.1} parent=1 // pred_check_branch
      %24 = sbr.rel (%p22) target = $region25
    $region24: #{line_forward.1} parent=1 // pred_region
      %vm25 = vcmask 0
      %26 = vst.msk [vmem:[#allocation2] sm:$0x1] %vm25, 0.0
    $region25: #{line_forward.1} parent=1 // pred_fallthru
      _
    %v27 = vld [vmem:[%s4] sm:$0x1]
    %v29 = vlaneseq
    %v30 = vshrl.u32 %v29, 7
    %v31 = vsub.s32 0, %v30
    %v32 = vrot.slane %v27, %v31
    %v34 = vld [vmem:[%s0] sm:$0xff]
    %v35 = vmul.f32 %v34, %v34
    %vm36 = vcmask 261120
    %v37 = vsel %vm36, %v35, 0.0
    %38 = vadd.xlane.f32.xlu0 %v37
    %v39 = vpop.xlane.xlu0 %38
    %v40 = vrsqrt.pop %v39
    %v41 = vmul.f32 %v39, %v40
    %vm42 = vcmp.eq.f32.partialorder %v39, inf
    %v43 = vsel %vm42, %v39, %v41
    %vm44 = vcmp.eq.f32.partialorder %v39, 0.0
    %v45 = vand.u32 %v39, 2147483648
    %v46 = vsel %vm44, %v45, %v43
    %v47 = vmul.f32 %v46, 0.17677669
    %v48 = vadd.f32 %v47, 1e-08
    %v49 = vrcp.pop %v48
    %v50 = vmul.f32 1.0, %v49
    %v51 = vmul.f32 %v34, %v50
    %v52 = vmul.f32 %v51, %v32
    %v53 = vld [vmem:[%s1] sm:$0xff]
    %v54 = vmul.f32 %v53, %v53
    %v55 = vsel %vm36, %v54, 0.0
    %56 = vadd.xlane.f32.xlu0 %v55
    %v57 = vpop.xlane.xlu0 %56
    %v58 = vrsqrt.pop %v57
    %v59 = vmul.f32 %v57, %v58
    %vm60 = vcmp.eq.f32.partialorder %v57, inf
    %v61 = vsel %vm60, %v57, %v59
    %vm62 = vcmp.eq.f32.partialorder %v57, 0.0
    %v63 = vand.u32 %v57, 2147483648
    %v64 = vsel %vm62, %v63, %v61
    %v65 = vmul.f32 %v64, 0.17677669
    %v66 = vadd.f32 %v65, 1e-08
    %v67 = vrcp.pop %v66
    %v68 = vmul.f32 1.0, %v67
    %v69 = vmul.f32 %v53, %v68
    %v70 = vmul.f32 %v69, %v32
    %v71 = vld [vmem:[%s2] sm:$0xff]
    %v72 = vmul.f32 %v71, %v71
    %v73 = vsel %vm36, %v72, 0.0
    %74 = vadd.xlane.f32.xlu0 %v73
    %v75 = vpop.xlane.xlu0 %74
    %v76 = vrsqrt.pop %v75
    %v77 = vmul.f32 %v75, %v76
    %vm78 = vcmp.eq.f32.partialorder %v75, inf
    %v79 = vsel %vm78, %v75, %v77
    %vm80 = vcmp.eq.f32.partialorder %v75, 0.0
    %v81 = vand.u32 %v75, 2147483648
    %v82 = vsel %vm80, %v81, %v79
    %v83 = vmul.f32 %v82, 0.17677669
    %v84 = vadd.f32 %v83, 1e-08
    %v85 = vrcp.pop %v84
    %v86 = vmul.f32 1.0, %v85
    %v87 = vmul.f32 %v71, %v86
    %v88 = vmul.f32 %v87, %v32
    %v89 = vld [vmem:[%s3] sm:$0xff]
    %v90 = vmul.f32 %v89, %v89
    %v91 = vsel %vm36, %v90, 0.0
    %92 = vadd.xlane.f32.xlu0 %v91
    %v93 = vpop.xlane.xlu0 %92
    %v94 = vrsqrt.pop %v93
    %v95 = vmul.f32 %v93, %v94
    %vm96 = vcmp.eq.f32.partialorder %v93, inf
    %v97 = vsel %vm96, %v93, %v95
    %vm98 = vcmp.eq.f32.partialorder %v93, 0.0
    %v99 = vand.u32 %v93, 2147483648
    %v100 = vsel %vm98, %v99, %v97
    %v101 = vmul.f32 %v100, 0.17677669
    %v102 = vadd.f32 %v101, 1e-08
    %v103 = vrcp.pop %v102
    %v104 = vmul.f32 1.0, %v103
    %v105 = vmul.f32 %v89, %v104
    %v106 = vmul.f32 %v105, %v32
    %v107 = vmul.f32 %v52, %v70
    %v108 = vsel %vm36, %v107, 0.0
    %109 = vadd.xlane.f32.xlu0 %v108
    %v110 = vpop.xlane.xlu0 %109
    %v111 = vmul.f32 %v88, %v106
    %v112 = vsel %vm36, %v111, 0.0
    %113 = vadd.xlane.f32.xlu0 %v112
    %v114 = vpop.xlane.xlu0 %113
    %v115 = vmul.f32 %v110, 0.03125
    %v116 = vmul.f32 %v114, 0.03125
    %v117 = vsub.f32 0.0, %v115
    %v118 = vmul.f32 %v117, 1.442695
    %v119 = vpow.pop %v118
    %v120 = vadd.f32 %v119, 1.0
    %v121 = vrcp.pop %v120
    %v122 = vmul.f32 1.0, %v121
    %v123 = vadd.f32 %v122, 1e-07
    %v124 = vlog2.pop %v123
    %v125 = vmul.f32 %v124, 0.6931472
    %v126 = vsub.f32 0.0, %v116
    %v127 = vsub.f32 0.0, %v126
    %v128 = vmul.f32 %v127, 1.442695
    %v129 = vpow.pop %v128
    %v130 = vadd.f32 %v129, 1.0
    %v131 = vrcp.pop %v130
    %v132 = vmul.f32 1.0, %v131
    %v133 = vadd.f32 %v132, 1e-07
    %v134 = vlog2.pop %v133
    %v135 = vmul.f32 %v134, 0.6931472
    %v136 = vadd.f32 %v125, %v135
    %v137 = vsub.f32 0.0, %v110
    %v138 = vmul.f32 %v137, 1.442695
    %v139 = vpow.pop %v138
    %v140 = vadd.f32 %v139, 1.0
    %v141 = vrcp.pop %v140
    %v142 = vmul.f32 1.0, %v141
    %v143 = vadd.f32 %v142, 1e-07
    %v144 = vlog2.pop %v143
    %v145 = vmul.f32 %v144, 0.6931472
    %v146 = vadd.f32 %v136, %v145
    %v147 = vsub.f32 0.0, %v114
    %v148 = vsub.f32 0.0, %v147
    %v149 = vmul.f32 %v148, 1.442695
    %v150 = vpow.pop %v149
    %v151 = vadd.f32 %v150, 1.0
    %v152 = vrcp.pop %v151
    %v153 = vmul.f32 1.0, %v152
    %v154 = vadd.f32 %v153, 1e-07
    %v155 = vlog2.pop %v154
    %v156 = vmul.f32 %v155, 0.6931472
    %v157 = vadd.f32 %v146, %v156
    %v158 = vlaneseq
    %v159 = vshrl.u32 %v158, 7
    %s160 = smul.u32 0, 8
    %v161 = vstv %s160
    %v162 = vadd.s32 %v159, %v161
    %vm163 = vcmp.lt.s32.totalorder %v162, 8
    %v164 = vsel %vm163, %v157, 0.0
    %v165 = vld [vmem:[#allocation2] sm:$0x1]
    %vm166 = vcmask 7168
    %v167 = vsel %vm166, %v164, 0.0
    %168 = vadd.xlane.f32.xlu0 %v167
    %v169 = vpop.xlane.xlu0 %168
    %v170 = vrot.slane %v169, 4
    %v171 = vadd.f32 %v169, %v170
    %v172 = vrot.slane %v171, 2
    %v173 = vadd.f32 %v171, %v172
    %v174 = vrot.slane %v173, 1
    %v175 = vadd.f32 %v173, %v174
    %s176 = vtos %v175
    %v177 = vstv %s176
    %v178 = vadd.f32 %v165, %v177
    %vm179 = vcmask 0
    %180 = vst.msk [vmem:[#allocation2] sm:$0x1] %vm179, %v178
    // Predicated region
    $region26: #{line_forward.1} parent=1 // pred_check
      %p181 = pneg %p21
    $region27: #{line_forward.1} parent=1 // pred_check_branch
      %183 = sbr.rel (%p181) target = $region29
    $region28: #{line_forward.1} parent=1 // pred_region
      %v184 = vld [vmem:[#allocation2] sm:$0x1]
      %s185 = vtos %v184
      %s186 = smul.f32 %s185, -0.125
      %s187 = scalar_lea.smem [#allocation3], 0
      %188 = sst [smem:[%s187]] %s186
    $region29: #{line_forward.1} parent=1 // pred_fallthru
      _
    // Predicated region
    $region30: #{line_forward.1} parent=1 // pred_check
      _
    $region31: #{line_forward.1} parent=1 // pred_check_branch
      %190 = sbr.rel (0) target = $region33
    $region32: #{line_forward.1} parent=1 // pred_region
      %s192 = ssub.s32 16, 16
      %193 = vsyncadd [#allocation4], %s192
      %196 = dma.smem_to_hbm [#allocation3], 16, %s5, [#allocation4]
    $region33: #{line_forward.1} parent=1 // pred_fallthru
      _
    // Predicated region
    $region34: #{line_forward.1} parent=1 // pred_check
      _
    $region35: #{line_forward.1} parent=1 // pred_check_branch
      %198 = sbr.rel (0) target = $region37
    $region36: #{line_forward.1} parent=1 // pred_region
      %199 = dma.done [#allocation4], 16
    $region37: #{line_forward.1} parent=1 // pred_fallthru
      _
    %200 = sfence
    %201 = vsyncpa [#allocation4], 1

</llo_original>
